<compile_context>
chip_gen: v6e
topology: v6e:2x2x1
jax: 0.10.0
libtpu: 0.0.40
codegen_flags: <defaults>
</compile_context>

<pallas_src>
import functools

import jax
import jax.numpy as jnp
import numpy as np
from jax.experimental import pallas as pl
from jax.experimental.pallas import tpu as pltpu


# ---------------------------------------------------------------------------
# Fused PALayer kernel
# ---------------------------------------------------------------------------
def _pa_layer_kernel(x_ref, w1_ref, b1_ref, w2_ref, b2_ref, o_ref):
    # x_ref : (C, TILE_HW)   channels on sublanes, pixels on lanes (lane-dense)
    # w1_ref: (mid, C)       first 1x1 conv weight
    # b1_ref: (mid, 1)
    # w2_ref: (mid, 1)       second 1x1 conv weight (column vector)
    # b2_ref: (1, 1)
    x = x_ref[...].astype(jnp.float32)

    # 1x1 conv #1 (C -> mid) on the MXU: (mid, C) @ (C, TILE_HW), f32 accumulate.
    h = jnp.dot(w1_ref[...], x, preferred_element_type=jnp.float32) + b1_ref[...]
    h = jnp.maximum(h, 0.0)

    # 1x1 conv #2 (mid -> 1): K=mid is tiny, so keep it off the MXU.
    # VPU multiply + sublane reduce (XLU), sigmoid on the EUP -> (1, TILE_HW).
    a = jnp.sum(h * w2_ref[...], axis=0, keepdims=True) + b2_ref[...]
    a = jax.nn.sigmoid(a)

    # Pixel attention: broadcast the (1, TILE_HW) gate over the C sublanes.
    o_ref[...] = (x * a).astype(o_ref.dtype)


# ---------------------------------------------------------------------------
# Wrapper
# ---------------------------------------------------------------------------
def pa_layer(x_nchw, w1, b1, w2, b2, *, tile_hw=8192):
    """PALayer forward.

    x_nchw: (N, C, H, W) float32 or bfloat16 (PyTorch NCHW layout, kept native)
    w1: (mid, C, 1, 1), b1: (mid,)   -- nn.Conv2d(C, mid, 1)
    w2: (1, mid, 1, 1), b2: (1,)     -- nn.Conv2d(mid, 1, 1)
    returns (N, C, H, W), same dtype as x_nchw
    """
    N, C, H, W = x_nchw.shape
    mid = w1.shape[0]
    HW = H * W

    # Free contiguous collapse (no transpose): NCHW -> (N, C, H*W).
    x = x_nchw.reshape(N, C, HW)

    # Pixel-tile size: lane-dense (multiple of 128) unless HW is smaller,
    # in which case the full extent is legal per the (8,128) rule.
    if tile_hw >= HW:
        tile_hw = HW
    else:
        tile_hw = max(128, (tile_hw // 128) * 128)
    grid = (N, pl.cdiv(HW, tile_hw))

    w1m = w1.reshape(mid, C).astype(jnp.float32)      # (mid, C)
    b1c = b1.reshape(mid, 1).astype(jnp.float32)      # (mid, 1)
    w2c = w2.reshape(1, mid).T.astype(jnp.float32)    # (mid, 1) column vector
    b2c = b2.reshape(1, 1).astype(jnp.float32)        # (1, 1)

    itemsize = jnp.dtype(x_nchw.dtype).itemsize
    cost = pl.CostEstimate(
        flops=2 * N * HW * C * mid + 2 * N * HW * mid + N * HW * C,
        transcendentals=N * HW,
        bytes_accessed=2 * N * C * HW * itemsize + (mid * C + 2 * mid + 1) * 4,
    )

    out = pl.pallas_call(
        _pa_layer_kernel,
        out_shape=jax.ShapeDtypeStruct((N, C, HW), x_nchw.dtype),
        grid=grid,
        in_specs=[
            # Pixel tiles, batch dim squeezed out of the kernel view.
            pl.BlockSpec((pl.Squeezed(), C, tile_hw), lambda n, t: (n, 0, t)),
            # Weights/biases stay VMEM-resident across grid steps.
            pl.BlockSpec((mid, C), lambda n, t: (0, 0)),
            pl.BlockSpec((mid, 1), lambda n, t: (0, 0)),
            pl.BlockSpec((mid, 1), lambda n, t: (0, 0)),
            pl.BlockSpec((1, 1), lambda n, t: (0, 0)),
        ],
        out_specs=pl.BlockSpec((pl.Squeezed(), C, tile_hw), lambda n, t: (n, 0, t)),
        compiler_params=pltpu.CompilerParams(
            dimension_semantics=("parallel", "parallel"),   # shard over 2 TCs on v7x
        ),
        cost_estimate=cost,
    )(x, w1m, b1c, w2c, b2c)

    # Free reshape back to NCHW.
    return out.reshape(N, C, H, W)


# ---------------------------------------------------------------------------
# Pure-JAX reference (for correctness check)
# ---------------------------------------------------------------------------
def pa_layer_ref(x_nchw, w1, b1, w2, b2):
    N, C, H, W = x_nchw.shape
    mid = w1.shape[0]
    xr = jnp.transpose(x_nchw, (0, 2, 3, 1)).reshape(-1, C).astype(jnp.float32)
    h = jnp.maximum(xr @ w1.reshape(mid, C).T + b1.reshape(1, mid), 0.0)
    a = jax.nn.sigmoid(h @ w2.reshape(1, mid).T + b2.reshape(1, 1))
    y = xr * a
    return jnp.transpose(y.reshape(N, H, W, C), (0, 3, 1, 2))


# ---------------------------------------------------------------------------
# Demo
# ---------------------------------------------------------------------------
if __name__ == "__main__":
    key = jax.random.PRNGKey(0)
    kx, kw1, kb1, kw2, kb2 = jax.random.split(key, 5)

    # channel=64 -> mid_channel = channel // 8 = 8 (module default).
    N, C, H, W = 2, 64, 32, 32
    mid = C // 8

    x = jax.random.normal(kx, (N, C, H, W), jnp.float32)
    w1 = 0.05 * jax.random.normal(kw1, (mid, C, 1, 1), jnp.float32)
    b1 = 0.01 * jax.random.normal(kb1, (mid,), jnp.float32)
    w2 = 0.05 * jax.random.normal(kw2, (1, mid, 1, 1), jnp.float32)
    b2 = 0.01 * jax.random.normal(kb2, (1,), jnp.float32)

    fwd = jax.jit(functools.partial(pa_layer, tile_hw=8192))
    out = fwd(x, w1, b1, w2, b2)
    jax.block_until_ready(out)

    ref = pa_layer_ref(x, w1, b1, w2, b2)
    assert out.shape == (N, C, H, W) and out.dtype == jnp.float32
    np.testing.assert_allclose(np.asarray(out), np.asarray(ref), rtol=1e-5, atol=1e-5)

    print("KERNEL_OK")
</pallas_src>

<mosaic_0001>
module attributes {stable_mosaic.version = 11 : i64} {
  func.func @_pa_layer_kernel(%arg0: i32, %arg1: i32, %arg2: memref<1x64x1024xf32, #tpu.memory_space<vmem>>, %arg3: memref<8x64xf32, #tpu.memory_space<vmem>>, %arg4: memref<8x1xf32, #tpu.memory_space<vmem>>, %arg5: memref<8x1xf32, #tpu.memory_space<vmem>>, %arg6: memref<1x1xf32, #tpu.memory_space<vmem>>, %arg7: memref<1x64x1024xf32, #tpu.memory_space<vmem>>) attributes {dimension_semantics = [#tpu.dimension_semantics<parallel>, #tpu.dimension_semantics<parallel>], iteration_bounds = array<i64: 2, 1>, scalar_prefetch = 0 : i64, scratch_operands = 0 : i64, tpu.core_type = #tpu.core_type<tc>, window_params = [{transform_indices = @transform_0, window_bounds = array<i64: 1, 64, 1024>}, {pipeline_mode = #tpu.pipeline_mode<synchronous>, transform_indices = @transform_1, window_bounds = array<i64: 8, 64>}, {pipeline_mode = #tpu.pipeline_mode<synchronous>, transform_indices = @transform_2, window_bounds = array<i64: 8, 1>}, {pipeline_mode = #tpu.pipeline_mode<synchronous>, transform_indices = @transform_3, window_bounds = array<i64: 8, 1>}, {pipeline_mode = #tpu.pipeline_mode<synchronous>, transform_indices = @transform_4, window_bounds = array<i64: 1, 1>}, {transform_indices = @transform_5, window_bounds = array<i64: 1, 64, 1024>}]} {
    %c0 = arith.constant 0 : index
    %c0_0 = arith.constant 0 : index
    %c0_1 = arith.constant 0 : index
    %0 = vector.load %arg2[%c0, %c0_0, %c0_1] : memref<1x64x1024xf32, #tpu.memory_space<vmem>>, vector<1x64x1024xf32>
    %1 = vector.shape_cast %0 : vector<1x64x1024xf32> to vector<64x1024xf32>
    %c0_2 = arith.constant 0 : index
    %c0_3 = arith.constant 0 : index
    %2 = vector.load %arg3[%c0_2, %c0_3] : memref<8x64xf32, #tpu.memory_space<vmem>>, vector<8x64xf32>
    %cst = arith.constant dense<0.000000e+00> : vector<8x1024xf32>
    %3 = tpu.matmul %2, %1, %cst {dimension_numbers = #tpu.dot_dimension_numbers<[1], [0], [0], [1], [0, 0, 1, 1], [], []>} : vector<8x64xf32>, vector<64x1024xf32>, vector<8x1024xf32> -> vector<8x1024xf32>
    %c0_4 = arith.constant 0 : index
    %c0_5 = arith.constant 0 : index
    %4 = vector.load %arg4[%c0_4, %c0_5] : memref<8x1xf32, #tpu.memory_space<vmem>>, vector<8x1xf32>
    %5 = vector.broadcast %4 : vector<8x1xf32> to vector<8x1024xf32>
    %6 = arith.addf %3, %5 : vector<8x1024xf32>
    %cst_6 = arith.constant 0.000000e+00 : f32
    %7 = vector.broadcast %cst_6 : f32 to vector<8x1024xf32>
    %8 = arith.maximumf %6, %7 : vector<8x1024xf32>
    %c0_7 = arith.constant 0 : index
    %c0_8 = arith.constant 0 : index
    %9 = vector.load %arg5[%c0_7, %c0_8] : memref<8x1xf32, #tpu.memory_space<vmem>>, vector<8x1xf32>
    %10 = vector.broadcast %9 : vector<8x1xf32> to vector<8x1024xf32>
    %11 = arith.mulf %8, %10 : vector<8x1024xf32>
    %cst_9 = arith.constant dense<0.000000e+00> : vector<1024xf32>
    %12 = vector.multi_reduction <add>, %11, %cst_9 [0] : vector<8x1024xf32> to vector<1024xf32>
    %13 = vector.shape_cast %12 : vector<1024xf32> to vector<1x1024xf32>
    %c0_10 = arith.constant 0 : index
    %c0_11 = arith.constant 0 : index
    %14 = vector.load %arg6[%c0_10, %c0_11] : memref<1x1xf32, #tpu.memory_space<vmem>>, vector<1x1xf32>
    %15 = vector.broadcast %14 : vector<1x1xf32> to vector<1x1024xf32>
    %16 = arith.addf %13, %15 : vector<1x1024xf32>
    %17 = arith.negf %16 : vector<1x1024xf32>
    %18 = math.exp %17 : vector<1x1024xf32>
    %cst_12 = arith.constant 1.000000e+00 : f32
    %19 = vector.broadcast %cst_12 : f32 to vector<1x1024xf32>
    %20 = arith.addf %19, %18 : vector<1x1024xf32>
    %21 = arith.divf %19, %20 : vector<1x1024xf32>
    %22 = vector.broadcast %21 : vector<1x1024xf32> to vector<64x1024xf32>
    %23 = arith.mulf %1, %22 : vector<64x1024xf32>
    %c0_13 = arith.constant 0 : index
    %c0_14 = arith.constant 0 : index
    %c0_15 = arith.constant 0 : index
    %24 = vector.load %arg7[%c0_13, %c0_14, %c0_15] : memref<1x64x1024xf32, #tpu.memory_space<vmem>>, vector<1x64x1024xf32>
    %25 = vector.shape_cast %24 : vector<1x64x1024xf32> to vector<64x1024xf32>
    %26 = vector.shape_cast %23 : vector<64x1024xf32> to vector<1x64x1024xf32>
    tpu.vector_store %arg7[%c0_13, %c0_14, %c0_15], %26 {strides = array<i32>} : memref<1x64x1024xf32, #tpu.memory_space<vmem>>, vector<1x64x1024xf32>,
    return
  }
  func.func @transform_0(%arg0: i32, %arg1: i32) -> (i32, i32, i32) {
    %c0_i32 = arith.constant 0 : i32
    %c0_i32_0 = arith.constant 0 : i32
    return %arg0, %c0_i32, %arg1 : i32, i32, i32
  }
  func.func @transform_1(%arg0: i32, %arg1: i32) -> (i32, i32) {
    %c0_i32 = arith.constant 0 : i32
    %c0_i32_0 = arith.constant 0 : i32
    %c0_i32_1 = arith.constant 0 : i32
    return %c0_i32, %c0_i32_0 : i32, i32
  }
  func.func @transform_2(%arg0: i32, %arg1: i32) -> (i32, i32) {
    %c0_i32 = arith.constant 0 : i32
    %c0_i32_0 = arith.constant 0 : i32
    %c0_i32_1 = arith.constant 0 : i32
    return %c0_i32, %c0_i32_0 : i32, i32
  }
  func.func @transform_3(%arg0: i32, %arg1: i32) -> (i32, i32) {
    %c0_i32 = arith.constant 0 : i32
    %c0_i32_0 = arith.constant 0 : i32
    %c0_i32_1 = arith.constant 0 : i32
    return %c0_i32, %c0_i32_0 : i32, i32
  }
  func.func @transform_4(%arg0: i32, %arg1: i32) -> (i32, i32) {
    %c0_i32 = arith.constant 0 : i32
    %c0_i32_0 = arith.constant 0 : i32
    %c0_i32_1 = arith.constant 0 : i32
    return %c0_i32, %c0_i32_0 : i32, i32
  }
  func.func @transform_5(%arg0: i32, %arg1: i32) -> (i32, i32, i32) {
    %c0_i32 = arith.constant 0 : i32
    %c0_i32_0 = arith.constant 0 : i32
    return %arg0, %c0_i32, %arg1 : i32, i32, i32
  }
}

</mosaic_0001>

<llo_original>
// kernel: pa_layer.1
$region0: #{pa_layer.1}
  #allocation0 [shape = 'u32[]', space=smem, size = 0x4, offset = 0x4, fixed_abs, tag = 'smem constant byte address 0x4 - core index']
  #allocation1 [shape = 'u32[144,128]{1,0:T(1,128)}', space=vmem, size = 0x12000, scoped, tag = 'internal scratch']
  #allocation2 [shape = 'f32[1,1]{1,0:T(1,128)S(1)}', space=vmem, size = 0x200, scoped, tag = 'scoped memory for pa_layer.1']
  %s0 = inlined_call_operand.vmem [shape: f32[2,64,1024], index: 0, kind: input, shape index: {}]
  %s1 = inlined_call_operand.vmem [shape: f32[8,64], index: 1, kind: input, shape index: {}]
  %s2 = inlined_call_operand.vmem [shape: f32[8,1], index: 2, kind: input, shape index: {}]
  %s3 = inlined_call_operand.vmem [shape: f32[8,1], index: 3, kind: input, shape index: {}]
  %s4 = inlined_call_operand.<no memory space> [shape: f32[1,1], index: 4, kind: input, shape index: {}]
  %s5 = inlined_call_operand.vmem [shape: f32[2,64,1024], index: 5, kind: output, shape index: {}]
  %s6 = sld [smem:[#allocation0]]
  $region53: #{pa_layer.1} parent=0
    _
  %s8 = ssub.s32 1, %s6
  %s9 = scalar_select 0, %s8, %s6
  %v10 = vstv %s4
  %11 = vst [vmem:[#allocation2] sm:$0x1] %v10
  loop: start=0, step=1, limit=4
  $region2: #{pa_layer.1} parent=0 // loop_pre_header
    _
  $region3: #{pa_layer.1} parent=0 // loop_header
    %s13 = sphi 0, %s17
    %p14 = scmp.ge.s32.totalorder %s13, 4
    %s20 = sphi 0, %s32
    %s21 = sphi 0, %s28
    %s22 = sphi 0, %s20
    %s23 = sphi 0, %s21
    %s24 = sphi 0, %s22
    %s25 = sphi 0, %s23
    %s37 = sphi 0, %s39
    %s40 = sphi 0, %s37
    %s41 = sphi 0, %s40
    %s57 = sphi 0, %s41
    %s61 = sphi 0, %s61
    %s63 = sphi 0, %s61
    %s64 = sphi 0, %s63
    %s78 = sphi 0, %s64
    %s82 = sphi 0, %s82
    %s84 = sphi 0, %s82
    %s85 = sphi 0, %s84
    %s99 = sphi 0, %s85
    %s103 = sphi 0, %s103
    %s105 = sphi 0, %s103
    %s106 = sphi 0, %s105
    %s120 = sphi 0, %s106
    %s124 = sphi 0, %s124
    %s126 = sphi 0, %s124
    %s127 = sphi 0, %s126
    %s141 = sphi 0, %s127
    %s149 = sphi 0, %s151
    %s152 = sphi 0, %s149
    %s153 = sphi 0, %s152
    %s169 = sphi 0, %s153
  $region4: #{pa_layer.1} parent=0 // loop_header_branch
    %16 = sbr.rel (%p14) target = $region8
  $region5: #{pa_layer.1} parent=0 // loop_body
    %s18 = ssub.s32 %s13, 1
    %s19 = ssub.s32 %s13, 2
    %s26 = sadd.s32 1, %s21
    %p27 = scmp.ge.s32.totalorder %s26, 1
    %s28 = scalar_select %p27, 0, %s26
    %s29 = sadd.s32 1, %s20
    %s30 = scalar_select %p27, %s29, %s20
    %p31 = scmp.ge.s32.totalorder %s30, 2
    %s32 = scalar_select %p31, 0, %s30
    %s33 = ssub.s32 %s20, %s32
    %s34 = ssub.s32 %s21, %s28
    %s35 = sor.u32 %s33, %s34
    %p36 = scmp.eq.s32.totalorder %s35, 0
    %s38 = sadd.s32 %s37, 1
    %s39 = scalar_select %p36, %s37, %s38
    %p42 = pneg %p36
    %p43 = scmp.eq.s32.totalorder %s13, 1
    %p44 = por %p42, %p43
    %p45 = scmp.ne.s32.totalorder %s37, %s40
    %p46 = scmp.eq.s32.totalorder %s13, 0
    %p47 = por %p45, %p46
    %p48 = scmp.ne.s32.totalorder %s37, %s40
    %p49 = scmp.eq.s32.totalorder %s18, 1
    %p50 = por %p48, %p49
    %p51 = scmp.ne.s32.totalorder %s40, %s41
    %p52 = scmp.eq.s32.totalorder %s18, 0
    %p53 = por %p51, %p52
    %p54 = scmp.ne.s32.totalorder %s40, %s41
    %p55 = scmp.eq.s32.totalorder %s19, 1
    %p56 = por %p54, %p55
    %p58 = scmp.ne.s32.totalorder %s41, %s57
    %p59 = scmp.eq.s32.totalorder %s19, 0
    %p60 = por %p58, %p59
    %s62 = sadd.s32 %s61, 1
    %p65 = scmp.eq.s32.totalorder %s13, 1
    %p66 = scmp.ne.s32.totalorder %s61, %s63
    %p67 = scmp.eq.s32.totalorder %s13, 0
    %p68 = por %p66, %p67
    %p69 = scmp.ne.s32.totalorder %s61, %s63
    %p70 = scmp.eq.s32.totalorder %s18, 1
    %p71 = por %p69, %p70
    %p72 = scmp.ne.s32.totalorder %s63, %s64
    %p73 = scmp.eq.s32.totalorder %s18, 0
    %p74 = por %p72, %p73
    %p75 = scmp.ne.s32.totalorder %s63, %s64
    %p76 = scmp.eq.s32.totalorder %s19, 1
    %p77 = por %p75, %p76
    %p79 = scmp.ne.s32.totalorder %s64, %s78
    %p80 = scmp.eq.s32.totalorder %s19, 0
    %p81 = por %p79, %p80
    %s83 = sadd.s32 %s82, 1
    %p86 = scmp.eq.s32.totalorder %s13, 1
    %p87 = scmp.ne.s32.totalorder %s82, %s84
    %p88 = scmp.eq.s32.totalorder %s13, 0
    %p89 = por %p87, %p88
    %p90 = scmp.ne.s32.totalorder %s82, %s84
    %p91 = scmp.eq.s32.totalorder %s18, 1
    %p92 = por %p90, %p91
    %p93 = scmp.ne.s32.totalorder %s84, %s85
    %p94 = scmp.eq.s32.totalorder %s18, 0
    %p95 = por %p93, %p94
    %p96 = scmp.ne.s32.totalorder %s84, %s85
    %p97 = scmp.eq.s32.totalorder %s19, 1
    %p98 = por %p96, %p97
    %p100 = scmp.ne.s32.totalorder %s85, %s99
    %p101 = scmp.eq.s32.totalorder %s19, 0
    %p102 = por %p100, %p101
    %s104 = sadd.s32 %s103, 1
    %p107 = scmp.eq.s32.totalorder %s13, 1
    %p108 = scmp.ne.s32.totalorder %s103, %s105
    %p109 = scmp.eq.s32.totalorder %s13, 0
    %p110 = por %p108, %p109
    %p111 = scmp.ne.s32.totalorder %s103, %s105
    %p112 = scmp.eq.s32.totalorder %s18, 1
    %p113 = por %p111, %p112
    %p114 = scmp.ne.s32.totalorder %s105, %s106
    %p115 = scmp.eq.s32.totalorder %s18, 0
    %p116 = por %p114, %p115
    %p117 = scmp.ne.s32.totalorder %s105, %s106
    %p118 = scmp.eq.s32.totalorder %s19, 1
    %p119 = por %p117, %p118
    %p121 = scmp.ne.s32.totalorder %s106, %s120
    %p122 = scmp.eq.s32.totalorder %s19, 0
    %p123 = por %p121, %p122
    %s125 = sadd.s32 %s124, 1
    %p128 = scmp.eq.s32.totalorder %s13, 1
    %p129 = scmp.ne.s32.totalorder %s124, %s126
    %p130 = scmp.eq.s32.totalorder %s13, 0
    %p131 = por %p129, %p130
    %p132 = scmp.ne.s32.totalorder %s124, %s126
    %p133 = scmp.eq.s32.totalorder %s18, 1
    %p134 = por %p132, %p133
    %p135 = scmp.ne.s32.totalorder %s126, %s127
    %p136 = scmp.eq.s32.totalorder %s18, 0
    %p137 = por %p135, %p136
    %p138 = scmp.ne.s32.totalorder %s126, %s127
    %p139 = scmp.eq.s32.totalorder %s19, 1
    %p140 = por %p138, %p139
    %p142 = scmp.ne.s32.totalorder %s127, %s141
    %p143 = scmp.eq.s32.totalorder %s19, 0
    %p144 = por %p142, %p143
    %s145 = ssub.s32 %s20, %s32
    %s146 = ssub.s32 %s21, %s28
    %s147 = sor.u32 %s145, %s146
    %p148 = scmp.eq.s32.totalorder %s147, 0
    %s150 = sadd.s32 %s149, 1
    %s151 = scalar_select %p148, %s149, %s150
    %p154 = pneg %p148
    %p155 = scmp.eq.s32.totalorder %s13, 1
    %p156 = por %p154, %p155
    %p157 = scmp.ne.s32.totalorder %s149, %s152
    %p158 = scmp.eq.s32.totalorder %s13, 0
    %p159 = por %p157, %p158
    %p160 = scmp.ne.s32.totalorder %s149, %s152
    %p161 = scmp.eq.s32.totalorder %s18, 1
    %p162 = por %p160, %p161
    %p163 = scmp.ne.s32.totalorder %s152, %s153
    %p164 = scmp.eq.s32.totalorder %s18, 0
    %p165 = por %p163, %p164
    %p166 = scmp.ne.s32.totalorder %s152, %s153
    %p167 = scmp.eq.s32.totalorder %s19, 1
    %p168 = por %p166, %p167
    %p170 = scmp.ne.s32.totalorder %s153, %s169
    %p171 = scmp.eq.s32.totalorder %s19, 0
    %p172 = por %p170, %p171
    %p173 = scmp.le.s32.totalorder 1, %s13
    %p174 = scmp.lt.s32.totalorder %s13, 3
    %p175 = pnand %p173, %p174
    %p176 = pneg %p175
    // Predicated region
    $region9: #{pa_layer.1} parent=5 // pred_check
      _
    $region10: #{pa_layer.1} parent=5 // pred_check_branch
      %178 = sbr.rel (%p175) target = $region12
    $region11: #{pa_layer.1} parent=5 // pred_region
      %s179 = ssub.s32 %s13, 1
      // Predicated region
      $region13: #{pa_layer.1} parent=11 // pred_check
        %p180 = pneg %p74
      $region14: #{pa_layer.1} parent=11 // pred_check_branch
        %182 = sbr.rel (%p180) target = $region16
      $region15: #{pa_layer.1} parent=11 // pred_region
        _
      $region16: #{pa_layer.1} parent=11 // pred_fallthru
        _
      // Predicated region
      $region17: #{pa_layer.1} parent=11 // pred_check
        %p183 = pneg %p95
      $region18: #{pa_layer.1} parent=11 // pred_check_branch
        %185 = sbr.rel (%p183) target = $region20
      $region19: #{pa_layer.1} parent=11 // pred_region
        _
      $region20: #{pa_layer.1} parent=11 // pred_fallthru
        _
      // Predicated region
      $region21: #{pa_layer.1} parent=11 // pred_check
        %p186 = pneg %p116
      $region22: #{pa_layer.1} parent=11 // pred_check_branch
        %188 = sbr.rel (%p186) target = $region24
      $region23: #{pa_layer.1} parent=11 // pred_region
        _
      $region24: #{pa_layer.1} parent=11 // pred_fallthru
        _
      // Predicated region
      $region25: #{pa_layer.1} parent=11 // pred_check
        %p189 = pneg %p137
      $region26: #{pa_layer.1} parent=11 // pred_check_branch
        %191 = sbr.rel (%p189) target = $region28
      $region27: #{pa_layer.1} parent=11 // pred_region
        _
      $region28: #{pa_layer.1} parent=11 // pred_fallthru
        _
    $region12: #{pa_layer.1} parent=5 // pred_fallthru
      _
    %p192 = scmp.lt.s32.totalorder %s13, 2
    // Predicated region
    $region29: #{pa_layer.1} parent=5 // pred_check
      %p193 = pneg %p192
    $region30: #{pa_layer.1} parent=5 // pred_check_branch
      %195 = sbr.rel (%p193) target = $region32
    $region31: #{pa_layer.1} parent=5 // pred_region
      // Predicated region
      $region33: #{pa_layer.1} parent=31 // pred_check
        %p196 = pneg %p47
      $region34: #{pa_layer.1} parent=31 // pred_check_branch
        %198 = sbr.rel (%p196) target = $region36
      $region35: #{pa_layer.1} parent=31 // pred_region
        %s199 = smul.u32 8, %s21
        %p200 = scmp.lt.s32.totalorder %s20, 1
        %s201 = scalar_select %p200, %s20, 1
        %p202 = scmp.lt.s32.totalorder %s199, 7
        %s203 = scalar_select %p202, %s199, 7
        %s204 = smul.addr %s201, 64
        %s205 = sadd.s32 %s203, %s204
        %s206 = smul.addr %s205, 8
        %s207 = scalar_lea.vmem %s0, %s206
        %s208 = smul.u32 8, %s21
      $region36: #{pa_layer.1} parent=31 // pred_fallthru
        _
    $region32: #{pa_layer.1} parent=5 // pred_fallthru
      _
    %p209 = scmp.le.s32.totalorder 1, %s13
    %p210 = scmp.lt.s32.totalorder %s13, 3
    %p211 = pnand %p209, %p210
    %p212 = pneg %p211
    // Predicated region
    $region37: #{pa_layer.1} parent=5 // pred_check
      _
    $region38: #{pa_layer.1} parent=5 // pred_check_branch
      %214 = sbr.rel (%p211) target = $region40
    $region39: #{pa_layer.1} parent=5 // pred_region
      %s215 = ssub.s32 %s13, 1
      %s216 = smul.u32 8, %s23
      %p217 = scmp.lt.s32.totalorder %s22, 1
      %s218 = scalar_select %p217, %s22, 1
      %p219 = scmp.lt.s32.totalorder %s216, 7
      %s220 = scalar_select %p219, %s216, 7
      %s221 = smul.addr %s218, 64
      %s222 = sadd.s32 %s220, %s221
      %s223 = smul.addr %s222, 8
      %s224 = scalar_lea.vmem %s0, %s223
      %p225 = pneg %p53
      %p226 = pneg %p50
      %p227 = pneg %p74
      %p228 = pneg %p71
      %p229 = pneg %p95
      %p230 = pneg %p92
      %p231 = pneg %p116
      %p232 = pneg %p113
      %p233 = pneg %p137
      %p234 = pneg %p134
      %p235 = pneg %p165
      %p236 = pneg %p162
      %s237 = smul.u32 8, %s23
      %p238 = scmp.lt.s32.totalorder %s22, 1
      %s239 = scalar_select %p238, %s22, 1
      %p240 = scmp.lt.s32.totalorder %s237, 7
      %s241 = scalar_select %p240, %s237, 7
      %s242 = smul.addr %s239, 64
      %s243 = sadd.s32 %s241, %s242
      %s244 = smul.addr %s243, 8
      %s245 = scalar_lea.vmem %s5, %s244
      %s246 = smul.u32 8, %s23
      %p247 = scmp.lt.s32.totalorder %s22, 1
      %s248 = scalar_select %p247, %s22, 1
      %p249 = scmp.lt.s32.totalorder %s246, 7
      %s250 = scalar_select %p249, %s246, 7
      %s251 = smul.addr %s248, 64
      %s252 = sadd.s32 %s250, %s251
      %s253 = smul.addr %s252, 8
      %s254 = scalar_lea.vmem %s0, %s253
      %s255 = smul.u32 8, %s23
      %s256 = smul.u32 8, %s23
      %p257 = scmp.lt.s32.totalorder %s22, 1
      %s258 = scalar_select %p257, %s22, 1
      %p259 = scmp.lt.s32.totalorder %s256, 7
      %s260 = scalar_select %p259, %s256, 7
      %s261 = smul.addr %s258, 64
      %s262 = sadd.s32 %s260, %s261
      %s263 = smul.addr %s262, 8
      %s264 = scalar_lea.vmem %s5, %s263
      %s265 = smul.u32 8, %s23
      %v266 = vld [vmem:[%s254] sm:$0xff]
      %v267 = vld [vmem:[%s254 + $0x8] sm:$0xff]
      %v268 = vld [vmem:[%s254 + $0x10] sm:$0xff]
      %v269 = vld [vmem:[%s254 + $0x18] sm:$0xff]
      %v270 = vld [vmem:[%s254 + $0x20] sm:$0xff]
      %v271 = vld [vmem:[%s254 + $0x28] sm:$0xff]
      %v272 = vld [vmem:[%s254 + $0x30] sm:$0xff]
      %v273 = vld [vmem:[%s254 + $0x38] sm:$0xff]
      %v274 = vld [vmem:[%s254 + $0x40] sm:$0xff]
      %v275 = vld [vmem:[%s254 + $0x48] sm:$0xff]
      %v276 = vld [vmem:[%s254 + $0x50] sm:$0xff]
      %v277 = vld [vmem:[%s254 + $0x58] sm:$0xff]
      %v278 = vld [vmem:[%s254 + $0x60] sm:$0xff]
      %v279 = vld [vmem:[%s254 + $0x68] sm:$0xff]
      %v280 = vld [vmem:[%s254 + $0x70] sm:$0xff]
      %v281 = vld [vmem:[%s254 + $0x78] sm:$0xff]
      %v282 = vld [vmem:[%s254 + $0x80] sm:$0xff]
      %v283 = vld [vmem:[%s254 + $0x88] sm:$0xff]
      %v284 = vld [vmem:[%s254 + $0x90] sm:$0xff]
      %v285 = vld [vmem:[%s254 + $0x98] sm:$0xff]
      %v286 = vld [vmem:[%s254 + $0xa0] sm:$0xff]
      %v287 = vld [vmem:[%s254 + $0xa8] sm:$0xff]
      %v288 = vld [vmem:[%s254 + $0xb0] sm:$0xff]
      %v289 = vld [vmem:[%s254 + $0xb8] sm:$0xff]
      %v290 = vld [vmem:[%s254 + $0xc0] sm:$0xff]
      %v291 = vld [vmem:[%s254 + $0xc8] sm:$0xff]
      %v292 = vld [vmem:[%s254 + $0xd0] sm:$0xff]
      %v293 = vld [vmem:[%s254 + $0xd8] sm:$0xff]
      %v294 = vld [vmem:[%s254 + $0xe0] sm:$0xff]
      %v295 = vld [vmem:[%s254 + $0xe8] sm:$0xff]
      %v296 = vld [vmem:[%s254 + $0xf0] sm:$0xff]
      %v297 = vld [vmem:[%s254 + $0xf8] sm:$0xff]
      %v298 = vld [vmem:[%s254 + $0x100] sm:$0xff]
      %v299 = vld [vmem:[%s254 + $0x108] sm:$0xff]
      %v300 = vld [vmem:[%s254 + $0x110] sm:$0xff]
      %v301 = vld [vmem:[%s254 + $0x118] sm:$0xff]
      %v302 = vld [vmem:[%s254 + $0x120] sm:$0xff]
      %v303 = vld [vmem:[%s254 + $0x128] sm:$0xff]
      %v304 = vld [vmem:[%s254 + $0x130] sm:$0xff]
      %v305 = vld [vmem:[%s254 + $0x138] sm:$0xff]
      %v306 = vld [vmem:[%s254 + $0x140] sm:$0xff]
      %v307 = vld [vmem:[%s254 + $0x148] sm:$0xff]
      %v308 = vld [vmem:[%s254 + $0x150] sm:$0xff]
      %v309 = vld [vmem:[%s254 + $0x158] sm:$0xff]
      %v310 = vld [vmem:[%s254 + $0x160] sm:$0xff]
      %v311 = vld [vmem:[%s254 + $0x168] sm:$0xff]
      %v312 = vld [vmem:[%s254 + $0x170] sm:$0xff]
      %v313 = vld [vmem:[%s254 + $0x178] sm:$0xff]
      %v314 = vld [vmem:[%s254 + $0x180] sm:$0xff]
      %v315 = vld [vmem:[%s254 + $0x188] sm:$0xff]
      %v316 = vld [vmem:[%s254 + $0x190] sm:$0xff]
      %v317 = vld [vmem:[%s254 + $0x198] sm:$0xff]
      %v318 = vld [vmem:[%s254 + $0x1a0] sm:$0xff]
      %v319 = vld [vmem:[%s254 + $0x1a8] sm:$0xff]
      %v320 = vld [vmem:[%s254 + $0x1b0] sm:$0xff]
      %v321 = vld [vmem:[%s254 + $0x1b8] sm:$0xff]
      %v322 = vld [vmem:[%s254 + $0x1c0] sm:$0xff]
      %v323 = vld [vmem:[%s254 + $0x1c8] sm:$0xff]
      %v324 = vld [vmem:[%s254 + $0x1d0] sm:$0xff]
      %v325 = vld [vmem:[%s254 + $0x1d8] sm:$0xff]
      %v326 = vld [vmem:[%s254 + $0x1e0] sm:$0xff]
      %v327 = vld [vmem:[%s254 + $0x1e8] sm:$0xff]
      %v328 = vld [vmem:[%s254 + $0x1f0] sm:$0xff]
      %v329 = vld [vmem:[%s254 + $0x1f8] sm:$0xff]
      %v330 = vld [vmem:[%s1] sm:$0xff]
      %v331 = vld [vmem:[%s2] sm:$0xff]
      %333 = vset.pattern.permute.xlu0 0
      %334 = vperm.xlu0 %333, %v331
      %v335 = vpop.permute.xlu0 %334
      %vm337 = vcmask 523264
      %v339 = vsel %vm337, %v330, 0
      %341 = vmatprep.subr.mxu0 0.0
      %342 = vmatpush1.msra.mxu0 0.0
      %343 = vmatprep.subr.mxu0 0.0
      %344 = vmatpush1.msra.mxu0 0.0
      %345 = vmatprep.subr.mxu0 0.0
      %346 = vmatpush1.msra.mxu0 0.0
      %347 = vmatprep.subr.mxu0 0.0
      %348 = vmatpush1.msra.mxu0 0.0
      %349 = vmatprep.subr.mxu0 0.0
      %350 = vmatpush1.msra.mxu0 0.0
      %351 = vmatprep.subr.mxu0 0.0
      %352 = vmatpush1.msra.mxu0 0.0
      %353 = vmatprep.subr.mxu0 0.0
      %354 = vmatpush1.msra.mxu0 0.0
      %355 = vmatprep.subr.mxu0 0.0
      %356 = vmatpush1.msra.mxu0 0.0
      %357 = vmatprep.subr.mxu0 %v323
      %358 = vmatpush1.msra.mxu0 %v322
      %359 = vmatprep.subr.mxu0 %v315
      %360 = vmatpush1.msra.mxu0 %v314
      %361 = vmatprep.subr.mxu0 %v307
      %362 = vmatpush1.msra.mxu0 %v306
      %363 = vmatprep.subr.mxu0 %v299
      %364 = vmatpush1.msra.mxu0 %v298
      %365 = vmatprep.subr.mxu0 %v291
      %366 = vmatpush1.msra.mxu0 %v290
      %367 = vmatprep.subr.mxu0 %v283
      %368 = vmatpush1.msra.mxu0 %v282
      %369 = vmatprep.subr.mxu0 %v275
      %370 = vmatpush1.msra.mxu0 %v274
      %371 = vmatprep.subr.mxu0 %v267
      %372 = vmatpush1.msra.mxu0 %v266
      %373 = vmatprep.subr.mxu0 0.0
      %374 = vmatpush2.msra.mxu0 0.0
      %375 = vmatprep.subr.mxu0 0.0
      %376 = vmatpush2.msra.mxu0 0.0
      %377 = vmatprep.subr.mxu0 0.0
      %378 = vmatpush2.msra.mxu0 0.0
      %379 = vmatprep.subr.mxu0 0.0
      %380 = vmatpush2.msra.mxu0 0.0
      %381 = vmatprep.subr.mxu0 0.0
      %382 = vmatpush2.msra.mxu0 0.0
      %383 = vmatprep.subr.mxu0 0.0
      %384 = vmatpush2.msra.mxu0 0.0
      %385 = vmatprep.subr.mxu0 0.0
      %386 = vmatpush2.msra.mxu0 0.0
      %387 = vmatprep.subr.mxu0 0.0
      %388 = vmatpush2.msra.mxu0 0.0
      %389 = vmatprep.subr.mxu0 0.0
      %390 = vmatpush2.msra.mxu0 0.0
      %391 = vmatprep.subr.mxu0 0.0
      %392 = vmatpush2.msra.mxu0 0.0
      %393 = vmatprep.subr.mxu0 0.0
      %394 = vmatpush2.msra.mxu0 0.0
      %395 = vmatprep.subr.mxu0 0.0
      %396 = vmatpush2.msra.mxu0 0.0
      %397 = vmatprep.subr.mxu0 0.0
      %398 = vmatpush2.msra.mxu0 0.0
      %399 = vmatprep.subr.mxu0 0.0
      %400 = vmatpush2.msra.mxu0 0.0
      %401 = vmatprep.subr.mxu0 0.0
      %402 = vmatpush2.msra.mxu0 0.0
      %403 = vmatprep.subr.mxu0 0.0
      %404 = vmatpush2.msra.mxu0 0.0
      %405 = vmatprep.mubr.f32.mxu0 0.0
      %406 = vmatmul.mubr.f32.gmra.mxu0 %v339
      %v407 = vpop.f32.mrf.mxu0
      %v408 = vadd.f32 %v335, %v407
      %v409 = vpop.f32.mrf.mxu0
      %v410 = vadd.f32 %v335, %v409
      %411 = vdwg.mxu0
      %412 = vmatprep.subr.mxu0 0.0
      %413 = vmatpush1.msra.mxu0 0.0
      %414 = vmatprep.subr.mxu0 0.0
      %415 = vmatpush1.msra.mxu0 0.0
      %416 = vmatprep.subr.mxu0 0.0
      %417 = vmatpush1.msra.mxu0 0.0
      %418 = vmatprep.subr.mxu0 0.0
      %419 = vmatpush1.msra.mxu0 0.0
      %420 = vmatprep.subr.mxu0 0.0
      %421 = vmatpush1.msra.mxu0 0.0
      %422 = vmatprep.subr.mxu0 0.0
      %423 = vmatpush1.msra.mxu0 0.0
      %424 = vmatprep.subr.mxu0 0.0
      %425 = vmatpush1.msra.mxu0 0.0
      %426 = vmatprep.subr.mxu0 0.0
      %427 = vmatpush1.msra.mxu0 0.0
      %428 = vmatprep.subr.mxu0 %v325
      %429 = vmatpush1.msra.mxu0 %v324
      %430 = vmatprep.subr.mxu0 %v317
      %431 = vmatpush1.msra.mxu0 %v316
      %432 = vmatprep.subr.mxu0 %v309
      %433 = vmatpush1.msra.mxu0 %v308
      %434 = vmatprep.subr.mxu0 %v301
      %435 = vmatpush1.msra.mxu0 %v300
      %436 = vmatprep.subr.mxu0 %v293
      %437 = vmatpush1.msra.mxu0 %v292
      %438 = vmatprep.subr.mxu0 %v285
      %439 = vmatpush1.msra.mxu0 %v284
      %440 = vmatprep.subr.mxu0 %v277
      %441 = vmatpush1.msra.mxu0 %v276
      %442 = vmatprep.subr.mxu0 %v269
      %443 = vmatpush1.msra.mxu0 %v268
      %444 = vmatprep.subr.mxu0 0.0
      %445 = vmatpush2.msra.mxu0 0.0
      %446 = vmatprep.subr.mxu0 0.0
      %447 = vmatpush2.msra.mxu0 0.0
      %448 = vmatprep.subr.mxu0 0.0
      %449 = vmatpush2.msra.mxu0 0.0
      %450 = vmatprep.subr.mxu0 0.0
      %451 = vmatpush2.msra.mxu0 0.0
      %452 = vmatprep.subr.mxu0 0.0
      %453 = vmatpush2.msra.mxu0 0.0
      %454 = vmatprep.subr.mxu0 0.0
      %455 = vmatpush2.msra.mxu0 0.0
      %456 = vmatprep.subr.mxu0 0.0
      %457 = vmatpush2.msra.mxu0 0.0
      %458 = vmatprep.subr.mxu0 0.0
      %459 = vmatpush2.msra.mxu0 0.0
      %460 = vmatprep.subr.mxu0 0.0
      %461 = vmatpush2.msra.mxu0 0.0
      %462 = vmatprep.subr.mxu0 0.0
      %463 = vmatpush2.msra.mxu0 0.0
      %464 = vmatprep.subr.mxu0 0.0
      %465 = vmatpush2.msra.mxu0 0.0
      %466 = vmatprep.subr.mxu0 0.0
      %467 = vmatpush2.msra.mxu0 0.0
      %468 = vmatprep.subr.mxu0 0.0
      %469 = vmatpush2.msra.mxu0 0.0
      %470 = vmatprep.subr.mxu0 0.0
      %471 = vmatpush2.msra.mxu0 0.0
      %472 = vmatprep.subr.mxu0 0.0
      %473 = vmatpush2.msra.mxu0 0.0
      %474 = vmatprep.subr.mxu0 0.0
      %475 = vmatpush2.msra.mxu0 0.0
      %476 = vmatprep.mubr.f32.mxu0 0.0
      %477 = vmatmul.mubr.f32.gmra.mxu0 %v339
      %v478 = vpop.f32.mrf.mxu0
      %v479 = vadd.f32 %v335, %v478
      %v480 = vpop.f32.mrf.mxu0
      %v481 = vadd.f32 %v335, %v480
      %482 = vdwg.mxu0
      %483 = vmatprep.subr.mxu0 0.0
      %484 = vmatpush1.msra.mxu0 0.0
      %485 = vmatprep.subr.mxu0 0.0
      %486 = vmatpush1.msra.mxu0 0.0
      %487 = vmatprep.subr.mxu0 0.0
      %488 = vmatpush1.msra.mxu0 0.0
      %489 = vmatprep.subr.mxu0 0.0
      %490 = vmatpush1.msra.mxu0 0.0
      %491 = vmatprep.subr.mxu0 0.0
      %492 = vmatpush1.msra.mxu0 0.0
      %493 = vmatprep.subr.mxu0 0.0
      %494 = vmatpush1.msra.mxu0 0.0
      %495 = vmatprep.subr.mxu0 0.0
      %496 = vmatpush1.msra.mxu0 0.0
      %497 = vmatprep.subr.mxu0 0.0
      %498 = vmatpush1.msra.mxu0 0.0
      %499 = vmatprep.subr.mxu0 %v327
      %500 = vmatpush1.msra.mxu0 %v326
      %501 = vmatprep.subr.mxu0 %v319
      %502 = vmatpush1.msra.mxu0 %v318
      %503 = vmatprep.subr.mxu0 %v311
      %504 = vmatpush1.msra.mxu0 %v310
      %505 = vmatprep.subr.mxu0 %v303
      %506 = vmatpush1.msra.mxu0 %v302
      %507 = vmatprep.subr.mxu0 %v295
      %508 = vmatpush1.msra.mxu0 %v294
      %509 = vmatprep.subr.mxu0 %v287
      %510 = vmatpush1.msra.mxu0 %v286
      %511 = vmatprep.subr.mxu0 %v279
      %512 = vmatpush1.msra.mxu0 %v278
      %513 = vmatprep.subr.mxu0 %v271
      %514 = vmatpush1.msra.mxu0 %v270
      %515 = vmatprep.subr.mxu0 0.0
      %516 = vmatpush2.msra.mxu0 0.0
      %517 = vmatprep.subr.mxu0 0.0
      %518 = vmatpush2.msra.mxu0 0.0
      %519 = vmatprep.subr.mxu0 0.0
      %520 = vmatpush2.msra.mxu0 0.0
      %521 = vmatprep.subr.mxu0 0.0
      %522 = vmatpush2.msra.mxu0 0.0
      %523 = vmatprep.subr.mxu0 0.0
      %524 = vmatpush2.msra.mxu0 0.0
      %525 = vmatprep.subr.mxu0 0.0
      %526 = vmatpush2.msra.mxu0 0.0
      %527 = vmatprep.subr.mxu0 0.0
      %528 = vmatpush2.msra.mxu0 0.0
      %529 = vmatprep.subr.mxu0 0.0
      %530 = vmatpush2.msra.mxu0 0.0
      %531 = vmatprep.subr.mxu0 0.0
      %532 = vmatpush2.msra.mxu0 0.0
      %533 = vmatprep.subr.mxu0 0.0
      %534 = vmatpush2.msra.mxu0 0.0
      %535 = vmatprep.subr.mxu0 0.0
      %536 = vmatpush2.msra.mxu0 0.0
      %537 = vmatprep.subr.mxu0 0.0
      %538 = vmatpush2.msra.mxu0 0.0
      %539 = vmatprep.subr.mxu0 0.0
      %540 = vmatpush2.msra.mxu0 0.0
      %541 = vmatprep.subr.mxu0 0.0
      %542 = vmatpush2.msra.mxu0 0.0
      %543 = vmatprep.subr.mxu0 0.0
      %544 = vmatpush2.msra.mxu0 0.0
      %545 = vmatprep.subr.mxu0 0.0
      %546 = vmatpush2.msra.mxu0 0.0
      %547 = vmatprep.mubr.f32.mxu0 0.0
      %548 = vmatmul.mubr.f32.gmra.mxu0 %v339
      %v549 = vpop.f32.mrf.mxu0
      %v550 = vadd.f32 %v335, %v549
      %v551 = vpop.f32.mrf.mxu0
      %v552 = vadd.f32 %v335, %v551
      %553 = vdwg.mxu0
      %554 = vmatprep.subr.mxu0 0.0
      %555 = vmatpush1.msra.mxu0 0.0
      %556 = vmatprep.subr.mxu0 0.0
      %557 = vmatpush1.msra.mxu0 0.0
      %558 = vmatprep.subr.mxu0 0.0
      %559 = vmatpush1.msra.mxu0 0.0
      %560 = vmatprep.subr.mxu0 0.0
      %561 = vmatpush1.msra.mxu0 0.0
      %562 = vmatprep.subr.mxu0 0.0
      %563 = vmatpush1.msra.mxu0 0.0
      %564 = vmatprep.subr.mxu0 0.0
      %565 = vmatpush1.msra.mxu0 0.0
      %566 = vmatprep.subr.mxu0 0.0
      %567 = vmatpush1.msra.mxu0 0.0
      %568 = vmatprep.subr.mxu0 0.0
      %569 = vmatpush1.msra.mxu0 0.0
      %570 = vmatprep.subr.mxu0 %v329
      %571 = vmatpush1.msra.mxu0 %v328
      %572 = vmatprep.subr.mxu0 %v321
      %573 = vmatpush1.msra.mxu0 %v320
      %574 = vmatprep.subr.mxu0 %v313
      %575 = vmatpush1.msra.mxu0 %v312
      %576 = vmatprep.subr.mxu0 %v305
      %577 = vmatpush1.msra.mxu0 %v304
      %578 = vmatprep.subr.mxu0 %v297
      %579 = vmatpush1.msra.mxu0 %v296
      %580 = vmatprep.subr.mxu0 %v289
      %581 = vmatpush1.msra.mxu0 %v288
      %582 = vmatprep.subr.mxu0 %v281
      %583 = vmatpush1.msra.mxu0 %v280
      %584 = vmatprep.subr.mxu0 %v273
      %585 = vmatpush1.msra.mxu0 %v272
      %586 = vmatprep.subr.mxu0 0.0
      %587 = vmatpush2.msra.mxu0 0.0
      %588 = vmatprep.subr.mxu0 0.0
      %589 = vmatpush2.msra.mxu0 0.0
      %590 = vmatprep.subr.mxu0 0.0
      %591 = vmatpush2.msra.mxu0 0.0
      %592 = vmatprep.subr.mxu0 0.0
      %593 = vmatpush2.msra.mxu0 0.0
      %594 = vmatprep.subr.mxu0 0.0
      %595 = vmatpush2.msra.mxu0 0.0
      %596 = vmatprep.subr.mxu0 0.0
      %597 = vmatpush2.msra.mxu0 0.0
      %598 = vmatprep.subr.mxu0 0.0
      %599 = vmatpush2.msra.mxu0 0.0
      %600 = vmatprep.subr.mxu0 0.0
      %601 = vmatpush2.msra.mxu0 0.0
      %602 = vmatprep.subr.mxu0 0.0
      %603 = vmatpush2.msra.mxu0 0.0
      %604 = vmatprep.subr.mxu0 0.0
      %605 = vmatpush2.msra.mxu0 0.0
      %606 = vmatprep.subr.mxu0 0.0
      %607 = vmatpush2.msra.mxu0 0.0
      %608 = vmatprep.subr.mxu0 0.0
      %609 = vmatpush2.msra.mxu0 0.0
      %610 = vmatprep.subr.mxu0 0.0
      %611 = vmatpush2.msra.mxu0 0.0
      %612 = vmatprep.subr.mxu0 0.0
      %613 = vmatpush2.msra.mxu0 0.0
      %614 = vmatprep.subr.mxu0 0.0
      %615 = vmatpush2.msra.mxu0 0.0
      %616 = vmatprep.subr.mxu0 0.0
      %617 = vmatpush2.msra.mxu0 0.0
      %618 = vmatprep.mubr.f32.mxu0 0.0
      %619 = vmatmul.mubr.f32.gmra.mxu0 %v339
      %v620 = vpop.f32.mrf.mxu0
      %v621 = vadd.f32 %v335, %v620
      %v622 = vpop.f32.mrf.mxu0
      %v623 = vadd.f32 %v335, %v622
      %624 = vdwg.mxu0
      %v625 = vmax.f32 %v408, 0.0
      %v626 = vmax.f32 %v410, 0.0
      %v627 = vmax.f32 %v479, 0.0
      %v628 = vmax.f32 %v481, 0.0
      %v629 = vmax.f32 %v550, 0.0
      %v630 = vmax.f32 %v552, 0.0
      %v631 = vmax.f32 %v621, 0.0
      %v632 = vmax.f32 %v623, 0.0
      %v633 = vld [vmem:[%s3] sm:$0xff]
      %635 = vset.pattern.permute.xlu0 0
      %636 = vperm.xlu0 %635, %v633
      %v637 = vpop.permute.xlu0 %636
      %v639 = vmul.f32 %v625, %v637
      %v640 = vmul.f32 %v626, %v637
      %v641 = vmul.f32 %v627, %v637
      %v642 = vmul.f32 %v628, %v637
      %v643 = vmul.f32 %v629, %v637
      %v644 = vmul.f32 %v630, %v637
      %v645 = vmul.f32 %v631, %v637
      %v646 = vmul.f32 %v632, %v637
      %v647 = vrot.slane %v639, 4
      %v648 = vadd.f32 %v639, %v647
      %v649 = vrot.slane %v648, 2
      %v650 = vadd.f32 %v648, %v649
      %v651 = vrot.slane %v650, 1
      %v652 = vadd.f32 %v650, %v651
      %v653 = vrot.slane %v640, 4
      %v654 = vadd.f32 %v640, %v653
      %v655 = vrot.slane %v654, 2
      %v656 = vadd.f32 %v654, %v655
      %v657 = vrot.slane %v656, 1
      %v658 = vadd.f32 %v656, %v657
      %v659 = vrot.slane %v641, 4
      %v660 = vadd.f32 %v641, %v659
      %v661 = vrot.slane %v660, 2
      %v662 = vadd.f32 %v660, %v661
      %v663 = vrot.slane %v662, 1
      %v664 = vadd.f32 %v662, %v663
      %v665 = vrot.slane %v642, 4
      %v666 = vadd.f32 %v642, %v665
      %v667 = vrot.slane %v666, 2
      %v668 = vadd.f32 %v666, %v667
      %v669 = vrot.slane %v668, 1
      %v670 = vadd.f32 %v668, %v669
      %v671 = vrot.slane %v643, 4
      %v672 = vadd.f32 %v643, %v671
      %v673 = vrot.slane %v672, 2
      %v674 = vadd.f32 %v672, %v673
      %v675 = vrot.slane %v674, 1
      %v676 = vadd.f32 %v674, %v675
      %v677 = vrot.slane %v644, 4
      %v678 = vadd.f32 %v644, %v677
      %v679 = vrot.slane %v678, 2
      %v680 = vadd.f32 %v678, %v679
      %v681 = vrot.slane %v680, 1
      %v682 = vadd.f32 %v680, %v681
      %v683 = vrot.slane %v645, 4
      %v684 = vadd.f32 %v645, %v683
      %v685 = vrot.slane %v684, 2
      %v686 = vadd.f32 %v684, %v685
      %v687 = vrot.slane %v686, 1
      %v688 = vadd.f32 %v686, %v687
      %v689 = vrot.slane %v646, 4
      %v690 = vadd.f32 %v646, %v689
      %v691 = vrot.slane %v690, 2
      %v692 = vadd.f32 %v690, %v691
      %v693 = vrot.slane %v692, 1
      %v694 = vadd.f32 %v692, %v693
      %v695 = vld [vmem:[#allocation2] sm:$0x1]
      %697 = vset.pattern.permute.xlu0 0
      %698 = vperm.xlu0 %697, %v695
      %v699 = vpop.permute.xlu0 %698
      %v701 = vlaneseq
      %v702 = vshrl.u32 %v701, 7
      %v703 = vsub.s32 0, %v702
      %v704 = vrot.slane %v699, %v703
      %v705 = vadd.f32 %v652, %v704
      %v706 = vadd.f32 %v658, %v704
      %v707 = vadd.f32 %v664, %v704
      %v708 = vadd.f32 %v670, %v704
      %v709 = vadd.f32 %v676, %v704
      %v710 = vadd.f32 %v682, %v704
      %v711 = vadd.f32 %v688, %v704
      %v712 = vadd.f32 %v694, %v704
      %v713 = vxor.u32 %v705, 2147483648
      %v714 = vxor.u32 %v706, 2147483648
      %v715 = vxor.u32 %v707, 2147483648
      %v716 = vxor.u32 %v708, 2147483648
      %v717 = vxor.u32 %v709, 2147483648
      %v718 = vxor.u32 %v710, 2147483648
      %v719 = vxor.u32 %v711, 2147483648
      %v720 = vxor.u32 %v712, 2147483648
      %v721 = vmul.f32 %v713, 1.442695
      %v722 = vpow.pop %v721
      %v723 = vmul.f32 %v714, 1.442695
      %v724 = vpow.pop %v723
      %v725 = vmul.f32 %v715, 1.442695
      %v726 = vpow.pop %v725
      %v727 = vmul.f32 %v716, 1.442695
      %v728 = vpow.pop %v727
      %v729 = vmul.f32 %v717, 1.442695
      %v730 = vpow.pop %v729
      %v731 = vmul.f32 %v718, 1.442695
      %v732 = vpow.pop %v731
      %v733 = vmul.f32 %v719, 1.442695
      %v734 = vpow.pop %v733
      %v735 = vmul.f32 %v720, 1.442695
      %v736 = vpow.pop %v735
      %v737 = vadd.f32 %v722, 1.0
      %v738 = vadd.f32 %v724, 1.0
      %v739 = vadd.f32 %v726, 1.0
      %v740 = vadd.f32 %v728, 1.0
      %v741 = vadd.f32 %v730, 1.0
      %v742 = vadd.f32 %v732, 1.0
      %v743 = vadd.f32 %v734, 1.0
      %v744 = vadd.f32 %v736, 1.0
      %v745 = vrcp.pop %v737
      %v746 = vmul.f32 1.0, %v745
      %v747 = vrcp.pop %v738
      %v748 = vmul.f32 1.0, %v747
      %v749 = vrcp.pop %v739
      %v750 = vmul.f32 1.0, %v749
      %v751 = vrcp.pop %v740
      %v752 = vmul.f32 1.0, %v751
      %v753 = vrcp.pop %v741
      %v754 = vmul.f32 1.0, %v753
      %v755 = vrcp.pop %v742
      %v756 = vmul.f32 1.0, %v755
      %v757 = vrcp.pop %v743
      %v758 = vmul.f32 1.0, %v757
      %v759 = vrcp.pop %v744
      %v760 = vmul.f32 1.0, %v759
      %v761 = vmul.f32 %v266, %v746
      %v762 = vmul.f32 %v267, %v748
      %v763 = vmul.f32 %v268, %v750
      %v764 = vmul.f32 %v269, %v752
      %v765 = vmul.f32 %v270, %v754
      %v766 = vmul.f32 %v271, %v756
      %v767 = vmul.f32 %v272, %v758
      %v768 = vmul.f32 %v273, %v760
      %v769 = vmul.f32 %v274, %v746
      %v770 = vmul.f32 %v275, %v748
      %v771 = vmul.f32 %v276, %v750
      %v772 = vmul.f32 %v277, %v752
      %v773 = vmul.f32 %v278, %v754
      %v774 = vmul.f32 %v279, %v756
      %v775 = vmul.f32 %v280, %v758
      %v776 = vmul.f32 %v281, %v760
      %v777 = vmul.f32 %v282, %v746
      %v778 = vmul.f32 %v283, %v748
      %v779 = vmul.f32 %v284, %v750
      %v780 = vmul.f32 %v285, %v752
      %v781 = vmul.f32 %v286, %v754
      %v782 = vmul.f32 %v287, %v756
      %v783 = vmul.f32 %v288, %v758
      %v784 = vmul.f32 %v289, %v760
      %v785 = vmul.f32 %v290, %v746
      %v786 = vmul.f32 %v291, %v748
      %v787 = vmul.f32 %v292, %v750
      %v788 = vmul.f32 %v293, %v752
      %v789 = vmul.f32 %v294, %v754
      %v790 = vmul.f32 %v295, %v756
      %v791 = vmul.f32 %v296, %v758
      %v792 = vmul.f32 %v297, %v760
      %v793 = vmul.f32 %v298, %v746
      %v794 = vmul.f32 %v299, %v748
      %v795 = vmul.f32 %v300, %v750
      %v796 = vmul.f32 %v301, %v752
      %v797 = vmul.f32 %v302, %v754
      %v798 = vmul.f32 %v303, %v756
      %v799 = vmul.f32 %v304, %v758
      %v800 = vmul.f32 %v305, %v760
      %v801 = vmul.f32 %v306, %v746
      %v802 = vmul.f32 %v307, %v748
      %v803 = vmul.f32 %v308, %v750
      %v804 = vmul.f32 %v309, %v752
      %v805 = vmul.f32 %v310, %v754
      %v806 = vmul.f32 %v311, %v756
      %v807 = vmul.f32 %v312, %v758
      %v808 = vmul.f32 %v313, %v760
      %v809 = vmul.f32 %v314, %v746
      %v810 = vmul.f32 %v315, %v748
      %v811 = vmul.f32 %v316, %v750
      %v812 = vmul.f32 %v317, %v752
      %v813 = vmul.f32 %v318, %v754
      %v814 = vmul.f32 %v319, %v756
      %v815 = vmul.f32 %v320, %v758
      %v816 = vmul.f32 %v321, %v760
      %v817 = vmul.f32 %v322, %v746
      %v818 = vmul.f32 %v323, %v748
      %v819 = vmul.f32 %v324, %v750
      %v820 = vmul.f32 %v325, %v752
      %v821 = vmul.f32 %v326, %v754
      %v822 = vmul.f32 %v327, %v756
      %v823 = vmul.f32 %v328, %v758
      %v824 = vmul.f32 %v329, %v760
      %825 = vst [vmem:[%s264] sm:$0xff] %v761
      %826 = vst [vmem:[%s264 + $0x8] sm:$0xff] %v762
      %827 = vst [vmem:[%s264 + $0x10] sm:$0xff] %v763
      %828 = vst [vmem:[%s264 + $0x18] sm:$0xff] %v764
      %829 = vst [vmem:[%s264 + $0x20] sm:$0xff] %v765
      %830 = vst [vmem:[%s264 + $0x28] sm:$0xff] %v766
      %831 = vst [vmem:[%s264 + $0x30] sm:$0xff] %v767
      %832 = vst [vmem:[%s264 + $0x38] sm:$0xff] %v768
      %833 = vst [vmem:[%s264 + $0x40] sm:$0xff] %v769
      %834 = vst [vmem:[%s264 + $0x48] sm:$0xff] %v770
      %835 = vst [vmem:[%s264 + $0x50] sm:$0xff] %v771
      %836 = vst [vmem:[%s264 + $0x58] sm:$0xff] %v772
      %837 = vst [vmem:[%s264 + $0x60] sm:$0xff] %v773
      %838 = vst [vmem:[%s264 + $0x68] sm:$0xff] %v774
      %839 = vst [vmem:[%s264 + $0x70] sm:$0xff] %v775
      %840 = vst [vmem:[%s264 + $0x78] sm:$0xff] %v776
      %841 = vst [vmem:[%s264 + $0x80] sm:$0xff] %v777
      %842 = vst [vmem:[%s264 + $0x88] sm:$0xff] %v778
      %843 = vst [vmem:[%s264 + $0x90] sm:$0xff] %v779
      %844 = vst [vmem:[%s264 + $0x98] sm:$0xff] %v780
      %845 = vst [vmem:[%s264 + $0xa0] sm:$0xff] %v781
      %846 = vst [vmem:[%s264 + $0xa8] sm:$0xff] %v782
      %847 = vst [vmem:[%s264 + $0xb0] sm:$0xff] %v783
      %848 = vst [vmem:[%s264 + $0xb8] sm:$0xff] %v784
      %849 = vst [vmem:[%s264 + $0xc0] sm:$0xff] %v785
      %850 = vst [vmem:[%s264 + $0xc8] sm:$0xff] %v786
      %851 = vst [vmem:[%s264 + $0xd0] sm:$0xff] %v787
      %852 = vst [vmem:[%s264 + $0xd8] sm:$0xff] %v788
      %853 = vst [vmem:[%s264 + $0xe0] sm:$0xff] %v789
      %854 = vst [vmem:[%s264 + $0xe8] sm:$0xff] %v790
      %855 = vst [vmem:[%s264 + $0xf0] sm:$0xff] %v791
      %856 = vst [vmem:[%s264 + $0xf8] sm:$0xff] %v792
      %857 = vst [vmem:[%s264 + $0x100] sm:$0xff] %v793
      %858 = vst [vmem:[%s264 + $0x108] sm:$0xff] %v794
      %859 = vst [vmem:[%s264 + $0x110] sm:$0xff] %v795
      %860 = vst [vmem:[%s264 + $0x118] sm:$0xff] %v796
      %861 = vst [vmem:[%s264 + $0x120] sm:$0xff] %v797
      %862 = vst [vmem:[%s264 + $0x128] sm:$0xff] %v798
      %863 = vst [vmem:[%s264 + $0x130] sm:$0xff] %v799
      %864 = vst [vmem:[%s264 + $0x138] sm:$0xff] %v800
      %865 = vst [vmem:[%s264 + $0x140] sm:$0xff] %v801
      %866 = vst [vmem:[%s264 + $0x148] sm:$0xff] %v802
      %867 = vst [vmem:[%s264 + $0x150] sm:$0xff] %v803
      %868 = vst [vmem:[%s264 + $0x158] sm:$0xff] %v804
      %869 = vst [vmem:[%s264 + $0x160] sm:$0xff] %v805
      %870 = vst [vmem:[%s264 + $0x168] sm:$0xff] %v806
      %871 = vst [vmem:[%s264 + $0x170] sm:$0xff] %v807
      %872 = vst [vmem:[%s264 + $0x178] sm:$0xff] %v808
      %873 = vst [vmem:[%s264 + $0x180] sm:$0xff] %v809
      %874 = vst [vmem:[%s264 + $0x188] sm:$0xff] %v810
      %875 = vst [vmem:[%s264 + $0x190] sm:$0xff] %v811
      %876 = vst [vmem:[%s264 + $0x198] sm:$0xff] %v812
      %877 = vst [vmem:[%s264 + $0x1a0] sm:$0xff] %v813
      %878 = vst [vmem:[%s264 + $0x1a8] sm:$0xff] %v814
      %879 = vst [vmem:[%s264 + $0x1b0] sm:$0xff] %v815
      %880 = vst [vmem:[%s264 + $0x1b8] sm:$0xff] %v816
      %881 = vst [vmem:[%s264 + $0x1c0] sm:$0xff] %v817
      %882 = vst [vmem:[%s264 + $0x1c8] sm:$0xff] %v818
      %883 = vst [vmem:[%s264 + $0x1d0] sm:$0xff] %v819
      %884 = vst [vmem:[%s264 + $0x1d8] sm:$0xff] %v820
      %885 = vst [vmem:[%s264 + $0x1e0] sm:$0xff] %v821
      %886 = vst [vmem:[%s264 + $0x1e8] sm:$0xff] %v822
      %887 = vst [vmem:[%s264 + $0x1f0] sm:$0xff] %v823
      %888 = vst [vmem:[%s264 + $0x1f8] sm:$0xff] %v824
      %s889 = smul.u32 8, %s23
      %p890 = scmp.lt.s32.totalorder %s22, 1
      %s891 = scalar_select %p890, %s22, 1
      %p892 = scmp.lt.s32.totalorder %s889, 7
      %s893 = scalar_select %p892, %s889, 7
      %s894 = smul.addr %s891, 64
      %s895 = sadd.s32 %s893, %s894
      %s896 = smul.addr %s895, 8
      %s897 = scalar_lea.vmem %s5, %s896
      // Predicated region
      $region41: #{pa_layer.1} parent=39 // pred_check
        %p898 = pneg %p162
      $region42: #{pa_layer.1} parent=39 // pred_check_branch
        %900 = sbr.rel (%p898) target = $region44
      $region43: #{pa_layer.1} parent=39 // pred_region
        %s901 = smul.u32 8, %s23
      $region44: #{pa_layer.1} parent=39 // pred_fallthru
        _
    $region40: #{pa_layer.1} parent=5 // pred_fallthru
      _
    %p902 = scmp.le.s32.totalorder 2, %s13
    // Predicated region
    $region45: #{pa_layer.1} parent=5 // pred_check
      %p903 = pneg %p902
    $region46: #{pa_layer.1} parent=5 // pred_check_branch
      %905 = sbr.rel (%p903) target = $region48
    $region47: #{pa_layer.1} parent=5 // pred_region
      %s906 = ssub.s32 %s13, 2
      // Predicated region
      $region49: #{pa_layer.1} parent=47 // pred_check
        %p907 = pneg %p168
      $region50: #{pa_layer.1} parent=47 // pred_check_branch
        %909 = sbr.rel (%p907) target = $region52
      $region51: #{pa_layer.1} parent=47 // pred_region
        %s910 = smul.u32 8, %s25
        %p911 = scmp.lt.s32.totalorder %s24, 1
        %s912 = scalar_select %p911, %s24, 1
        %p913 = scmp.lt.s32.totalorder %s910, 7
        %s914 = scalar_select %p913, %s910, 7
        %s915 = smul.addr %s912, 64
        %s916 = sadd.s32 %s914, %s915
        %s917 = smul.addr %s916, 8
        %s918 = scalar_lea.vmem %s5, %s917
      $region52: #{pa_layer.1} parent=47 // pred_fallthru
        _
    $region48: #{pa_layer.1} parent=5 // pred_fallthru
      _
  $region6: #{pa_layer.1} parent=0 // loop_footer
    %s17 = sadd.s32 1, %s13
  $region7: #{pa_layer.1} parent=0 // loop_footer_branch
    %12 = sbr.rel target = $region3
  $region8: #{pa_layer.1} parent=0 // loop_exit
    _

</llo_original>
